<compile_context>
chip_gen: v5e
topology: v5e:2x2
jax: 0.10.0
libtpu: 0.0.40
codegen_flags: <defaults>
</compile_context>

<pallas_src>
import jax
import jax.numpy as jnp
from jax.experimental import pallas as pl
from jax.experimental.pallas import tpu as pltpu


def _self_attn_kernel(x_ref, w1_ref, b1_ref, w2_ref, o_ref):
    # x_ref : (Bt, S, D) block of batch elements
    # w1_ref: (D, D)  = torch W1^T  (so x @ w1_ref == x @ W1^T), VMEM-resident
    # b1_ref: (1, D)  VMEM-resident
    # w2_ref: (1, D)  = torch W2 row (used on the VPU, not the MXU), VMEM-resident
    # o_ref : (Bt, D)
    bt, S, D = x_ref.shape

    # --- Linear(dim, dim) + Tanh: one MXU matmul over all Bt*S rows ---------
    h = jnp.tanh(
        jnp.dot(x_ref[...].reshape(bt * S, D), w1_ref[...],
                preferred_element_type=jnp.float32)
        + b1_ref[...]
    )                                                          # (Bt*S, D) f32

    # --- Linear(dim, 1, bias=False): VPU multiply + lane reduce -------------
    s = jnp.sum(h.reshape(bt, S, D) * w2_ref[...][None], axis=-1)   # (Bt, S)

    # --- Softmax over the sequence axis (torch dim=1), lane reduces ---------
    s = s - jnp.max(s, axis=-1, keepdims=True)
    e = jnp.exp(s)
    a = e * pl.reciprocal(jnp.sum(e, axis=-1, keepdims=True), approx=True)

    # --- Weighted sum over the sequence: (x * a).sum(dim=1) -----------------
    # Re-read x from VMEM instead of reusing the pre-matmul value: keeps the
    # (Bt,S,D) live range short at bandwidth-sized blocks (avoids spill churn).
    acc = jnp.sum(x_ref[...].astype(jnp.float32) * a[:, :, None], axis=1)
    o_ref[...] = acc.astype(o_ref.dtype)


def prepare_params(w1, b1, w2, dtype=jnp.float32):
    """One-time preprocessing of torch-layout weights (hoisted off the call path)."""
    D = w1.shape[0]
    w1_t = jnp.asarray(w1, dtype).T                # (D, D)
    b1_row = jnp.asarray(b1, dtype).reshape(1, D)  # (1, D)
    w2_row = jnp.asarray(w2, dtype).reshape(1, D)  # (1, D)
    return w1_t, b1_row, w2_row


def _vmem_capacity_bytes():
    """Per-core VMEM capacity; conservative fallback keeps v7x (64 MiB/TC) safe."""
    try:
        cap = getattr(pltpu.get_tpu_info(), "vmem_capacity_bytes", None)
        if cap:
            return int(cap)
    except Exception:
        pass
    return 64 * 1024 * 1024


def _choose_block_b(B, S, D, itemsize, vmem_capacity):
    """Largest batch block that fits the chip's VMEM budget (inverted heuristic)."""
    # Per-batch-row footprint of one grid step:
    #   x block (double-buffered)              : 2 * S*D*itemsize
    #   out block (double-buffered)            : 2 * D*itemsize
    #   f32 intermediates (h, x_f32, exp, acc) : ~4 * S*D*4
    row_bytes = 2 * S * D * itemsize + 2 * D * itemsize + 4 * S * D * 4
    weight_bytes = (D * D + 2 * D) * 4            # resident, single-buffered
    budget = int(vmem_capacity * 0.75) - weight_bytes
    bt = max(budget // max(row_bytes, 1), 8)
    bt = (bt // 8) * 8                            # multiple of 8 (sublane-dense out block)

    if bt >= B:
        if B > 8:
            # Force >= 2 balanced blocks so the ("parallel",) batch axis can feed
            # both TensorCores on v7x; one extra grid step costs ~0.35 us.
            bt = ((-(-B // 2)) + 7) // 8 * 8
        else:
            bt = B                                # block == full batch dim (legal)

    # Balance block sizes across the grid (avoid a tiny ragged tail block).
    grid_b = -(-B // bt)
    bt_bal = ((-(-B // grid_b)) + 7) // 8 * 8
    if 8 <= bt_bal <= bt and -(-B // bt_bal) == grid_b:
        bt = bt_bal
    return max(bt, 1)


def self_attention_encoder(x, w1_t, b1_row, w2_row, *, block_b=None):
    """x: (B, S, D); w1_t: (D, D) pre-transposed; b1_row, w2_row: (1, D)."""
    B, S, D = x.shape
    itemsize = x.dtype.itemsize
    vmem_cap = _vmem_capacity_bytes()

    if block_b is None:
        block_b = _choose_block_b(B, S, D, itemsize, vmem_cap)

    grid_b = pl.cdiv(B, block_b)   # no host-side pad: boundary block covers the tail

    return pl.pallas_call(
        _self_attn_kernel,
        out_shape=jax.ShapeDtypeStruct((B, D), x.dtype),
        grid_spec=pltpu.PrefetchScalarGridSpec(
            num_scalar_prefetch=0,
            grid=(grid_b,),
            in_specs=[
                pl.BlockSpec((block_b, S, D), lambda b: (b, 0, 0)),        # x slab (pipelined)
                pl.BlockSpec(memory_space=pltpu.MemorySpace.VMEM),          # w1^T resident
                pl.BlockSpec(memory_space=pltpu.MemorySpace.VMEM),          # b1 row resident
                pl.BlockSpec(memory_space=pltpu.MemorySpace.VMEM),          # w2 row resident
            ],
            out_specs=pl.BlockSpec((block_b, D), lambda b: (b, 0)),         # sublane-dense out
        ),
        compiler_params=pltpu.CompilerParams(
            dimension_semantics=("parallel",),        # shards batch grid across TCs on v7x
            vmem_limit_bytes=int(vmem_cap * 0.8),     # chip-aware scoped VMEM limit
        ),
    )(x, w1_t, b1_row, w2_row)


def _reference(x, w1, b1, w2):
    # Pure-JAX reference mirroring the PyTorch module exactly.
    h = jnp.tanh(jnp.einsum("bsd,od->bso", x, w1) + b1)        # Linear(dim,dim)+Tanh
    s = jnp.einsum("bsd,od->bso", h, w2)                       # Linear(dim,1,no bias)
    a = jax.nn.softmax(s, axis=1)                              # Softmax(dim=1)
    return jnp.sum(x * a, axis=1)


if __name__ == "__main__":
    B, S, D = 2, 8, 32

    key = jax.random.PRNGKey(0)
    kx, kw1, kb1, kw2 = jax.random.split(key, 4)

    x = jax.random.normal(kx, (B, S, D), dtype=jnp.float32)

    # Deterministic synthetic parameters (shapes follow nn.Linear in __init__).
    bound = 1.0 / jnp.sqrt(D)
    w1 = jax.random.uniform(kw1, (D, D), minval=-bound, maxval=bound, dtype=jnp.float32)
    b1 = jax.random.uniform(kb1, (D,), minval=-bound, maxval=bound, dtype=jnp.float32)
    w2 = jax.random.uniform(kw2, (1, D), minval=-bound, maxval=bound, dtype=jnp.float32)

    params = prepare_params(w1, b1, w2)            # hoisted one-time preprocessing

    out = jax.block_until_ready(self_attention_encoder(x, *params))

    ref = _reference(x, w1, b1, w2)
    assert out.shape == (B, D)
    # approx=True softmax reciprocal -> slightly looser tolerance than 1e-5.
    assert jnp.allclose(out, ref, atol=2e-3, rtol=2e-3), "mismatch vs reference"

    print("KERNEL_OK")
</pallas_src>

<mosaic_0001>
module attributes {stable_mosaic.version = 11 : i64} {
  func.func @_self_attn_kernel(%arg0: i32, %arg1: memref<2x8x32xf32, #tpu.memory_space<vmem>>, %arg2: memref<32x32xf32, #tpu.memory_space<vmem>>, %arg3: memref<1x32xf32, #tpu.memory_space<vmem>>, %arg4: memref<1x32xf32, #tpu.memory_space<vmem>>, %arg5: memref<2x32xf32, #tpu.memory_space<vmem>>) attributes {dimension_semantics = [#tpu.dimension_semantics<parallel>], iteration_bounds = array<i64: 1>, scalar_prefetch = 0 : i64, scratch_operands = 0 : i64, tpu.core_type = #tpu.core_type<tc>, window_params = [{transform_indices = @transform_0, window_bounds = array<i64: 2, 8, 32>}, {pipeline_mode = #tpu.pipeline_mode<synchronous>, transform_indices = @transform_1, window_bounds = array<i64: 32, 32>}, {pipeline_mode = #tpu.pipeline_mode<synchronous>, transform_indices = @transform_2, window_bounds = array<i64: 1, 32>}, {pipeline_mode = #tpu.pipeline_mode<synchronous>, transform_indices = @transform_3, window_bounds = array<i64: 1, 32>}, {transform_indices = @transform_4, window_bounds = array<i64: 2, 32>}]} {
    %c0 = arith.constant 0 : index
    %c0_0 = arith.constant 0 : index
    %c0_1 = arith.constant 0 : index
    %0 = vector.load %arg1[%c0, %c0_0, %c0_1] : memref<2x8x32xf32, #tpu.memory_space<vmem>>, vector<2x8x32xf32>
    %1 = vector.shape_cast %0 : vector<2x8x32xf32> to vector<16x32xf32>
    %c0_2 = arith.constant 0 : index
    %c0_3 = arith.constant 0 : index
    %2 = vector.load %arg2[%c0_2, %c0_3] : memref<32x32xf32, #tpu.memory_space<vmem>>, vector<32x32xf32>
    %cst = arith.constant dense<0.000000e+00> : vector<16x32xf32>
    %3 = tpu.matmul %1, %2, %cst {dimension_numbers = #tpu.dot_dimension_numbers<[1], [0], [0], [1], [0, 0, 1, 1], [], []>} : vector<16x32xf32>, vector<32x32xf32>, vector<16x32xf32> -> vector<16x32xf32>
    %c0_4 = arith.constant 0 : index
    %c0_5 = arith.constant 0 : index
    %4 = vector.load %arg3[%c0_4, %c0_5] : memref<1x32xf32, #tpu.memory_space<vmem>>, vector<1x32xf32>
    %5 = vector.broadcast %4 : vector<1x32xf32> to vector<16x32xf32>
    %6 = arith.addf %3, %5 : vector<16x32xf32>
    %7 = math.tanh %6 : vector<16x32xf32>
    %8 = vector.shape_cast %7 : vector<16x32xf32> to vector<2x8x32xf32>
    %c0_6 = arith.constant 0 : index
    %c0_7 = arith.constant 0 : index
    %9 = vector.load %arg4[%c0_6, %c0_7] : memref<1x32xf32, #tpu.memory_space<vmem>>, vector<1x32xf32>
    %10 = vector.shape_cast %9 : vector<1x32xf32> to vector<1x1x32xf32>
    %11 = vector.broadcast %10 : vector<1x1x32xf32> to vector<2x8x32xf32>
    %12 = arith.mulf %8, %11 : vector<2x8x32xf32>
    %cst_8 = arith.constant dense<0.000000e+00> : vector<2x8xf32>
    %13 = vector.multi_reduction <add>, %12, %cst_8 [2] : vector<2x8x32xf32> to vector<2x8xf32>
    %cst_9 = arith.constant dense<0xFF800000> : vector<2xf32>
    %14 = vector.multi_reduction <maximumf>, %13, %cst_9 [1] : vector<2x8xf32> to vector<2xf32>
    %15 = vector.shape_cast %14 : vector<2xf32> to vector<2x1xf32>
    %16 = vector.broadcast %15 : vector<2x1xf32> to vector<2x8xf32>
    %17 = arith.subf %13, %16 : vector<2x8xf32>
    %18 = math.exp %17 : vector<2x8xf32>
    %cst_10 = arith.constant dense<0.000000e+00> : vector<2xf32>
    %19 = vector.multi_reduction <add>, %18, %cst_10 [1] : vector<2x8xf32> to vector<2xf32>
    %20 = vector.shape_cast %19 : vector<2xf32> to vector<2x1xf32>
    %21 = tpu.reciprocal %20 {approx = true} : vector<2x1xf32> -> vector<2x1xf32>
    %22 = vector.broadcast %21 : vector<2x1xf32> to vector<2x8xf32>
    %23 = arith.mulf %18, %22 : vector<2x8xf32>
    %c0_11 = arith.constant 0 : index
    %c0_12 = arith.constant 0 : index
    %c0_13 = arith.constant 0 : index
    %24 = vector.load %arg1[%c0_11, %c0_12, %c0_13] : memref<2x8x32xf32, #tpu.memory_space<vmem>>, vector<2x8x32xf32>
    %25 = vector.shape_cast %23 : vector<2x8xf32> to vector<2x8x1xf32>
    %26 = vector.broadcast %25 : vector<2x8x1xf32> to vector<2x8x32xf32>
    %27 = arith.mulf %24, %26 : vector<2x8x32xf32>
    %cst_14 = arith.constant dense<0.000000e+00> : vector<2x32xf32>
    %28 = vector.multi_reduction <add>, %27, %cst_14 [1] : vector<2x8x32xf32> to vector<2x32xf32>
    %c0_15 = arith.constant 0 : index
    %c0_16 = arith.constant 0 : index
    %29 = vector.load %arg5[%c0_15, %c0_16] : memref<2x32xf32, #tpu.memory_space<vmem>>, vector<2x32xf32>
    tpu.vector_store %arg5[%c0_15, %c0_16], %28 {strides = array<i32>} : memref<2x32xf32, #tpu.memory_space<vmem>>, vector<2x32xf32>,
    return
  }
  func.func @transform_0(%arg0: i32) -> (i32, i32, i32) {
    %c0_i32 = arith.constant 0 : i32
    %c0_i32_0 = arith.constant 0 : i32
    %c0_i32_1 = arith.constant 0 : i32
    return %arg0, %c0_i32, %c0_i32_0 : i32, i32, i32
  }
  func.func @transform_1(%arg0: i32) -> (i32, i32) {
    %c0_i32 = arith.constant 0 : i32
    %c0_i32_0 = arith.constant 0 : i32
    %c0_i32_1 = arith.constant 0 : i32
    return %c0_i32, %c0_i32_0 : i32, i32
  }
  func.func @transform_2(%arg0: i32) -> (i32, i32) {
    %c0_i32 = arith.constant 0 : i32
    %c0_i32_0 = arith.constant 0 : i32
    %c0_i32_1 = arith.constant 0 : i32
    return %c0_i32, %c0_i32_0 : i32, i32
  }
  func.func @transform_3(%arg0: i32) -> (i32, i32) {
    %c0_i32 = arith.constant 0 : i32
    %c0_i32_0 = arith.constant 0 : i32
    %c0_i32_1 = arith.constant 0 : i32
    return %c0_i32, %c0_i32_0 : i32, i32
  }
  func.func @transform_4(%arg0: i32) -> (i32, i32) {
    %c0_i32 = arith.constant 0 : i32
    %c0_i32_0 = arith.constant 0 : i32
    return %arg0, %c0_i32 : i32, i32
  }
}

</mosaic_0001>

<llo_original>
// kernel: tpu_custom_call.1
$region0: #{tpu_custom_call.1}
  #allocation0 [shape = 'u32[]', space=smem, size = 0x4, offset = 0x4, fixed_abs, tag = 'smem constant byte address 0x4 - core index']
  #allocation1 [shape = 'u32[72,128]{1,0:T(1,128)}', space=vmem, size = 0x9000, scoped, tag = 'internal scratch']
  %s0 = inlined_call_operand.hbm [shape: f32[2,8,32], index: 0, kind: input, shape index: {}]
  %s1 = inlined_call_operand.hbm [shape: f32[32,32], index: 1, kind: input, shape index: {}]
  %s2 = inlined_call_operand.vmem [shape: f32[1,32], index: 2, kind: input, shape index: {}]
  %s3 = inlined_call_operand.vmem [shape: f32[1,32], index: 3, kind: input, shape index: {}]
  %s4 = inlined_call_operand.hbm [shape: f32[2,32], index: 4, kind: output, shape index: {}]
  %s5 = sld [smem:[#allocation0]]
  $region34: #{tpu_custom_call.1} parent=0
    _
  %s7 = ssub.s32 1, %s5
  %s8 = scalar_select 0, %s7, %s5
  $region1: #{tpu_custom_call.1} parent=0
    #allocation2 [shape = 'u8[8192]{0}', space=vmem, size = 0x2000, scoped, tag = 'input window, operand 0, single buffered']
    #allocation3 [shape = 's32[1]{0}', space=sflag, size = 0x4, scoped, tag = 'scoped memory for tpu_custom_call.1']
    #allocation4 [shape = 's32[1]{0}', space=sflag, size = 0x4, scoped, tag = 'scoped memory for tpu_custom_call.1']
    #allocation5 [shape = 'u8[16384]{0}', space=vmem, size = 0x4000, scoped, tag = 'input window, operand 1, single buffered']
    #allocation6 [shape = 's32[1]{0}', space=sflag, size = 0x4, scoped, tag = 'scoped memory for tpu_custom_call.1']
    #allocation7 [shape = 'u8[1024]{0}', space=vmem, size = 0x400, scoped, tag = 'output window, operand 0, single buffered']
    %9 = vsyncpa [#allocation3], 0
    %10 = vsyncpa [#allocation6], 0
    %11 = vsyncpa [#allocation4], 0
    // Predicated region
    $region2: #{tpu_custom_call.1} parent=1 // pred_check
      _
    $region3: #{tpu_custom_call.1} parent=1 // pred_check_branch
      %13 = sbr.rel (0) target = $region5
    $region4: #{tpu_custom_call.1} parent=1 // pred_region
      %15 = vsyncadd [#allocation3], 0
      %s16 = sshll.u32 %s0, 4
      %s17 = int_to_ptr.hbm [resolvable:$true] %s16
      %s18 = sshll.u32 [#allocation2], 4
      %s19 = int_to_ptr.vmem [resolvable:$true] %s18
      %24 = dma.hbm_to_vmem [thread:$0]  %s17, 256, %s19, [#allocation3], 128, 128, 8
    $region5: #{tpu_custom_call.1} parent=1 // pred_fallthru
      _
    // Predicated region
    $region6: #{tpu_custom_call.1} parent=1 // pred_check
      _
    $region7: #{tpu_custom_call.1} parent=1 // pred_check_branch
      %26 = sbr.rel (0) target = $region9
    $region8: #{tpu_custom_call.1} parent=1 // pred_region
      %28 = vsyncadd [#allocation6], 0
      %s29 = sshll.u32 %s1, 4
      %s30 = int_to_ptr.hbm [resolvable:$true] %s29
      %s31 = sshll.u32 [#allocation5], 4
      %s32 = int_to_ptr.vmem [resolvable:$true] %s31
      %37 = dma.hbm_to_vmem [thread:$0]  %s30, 512, %s32, [#allocation6], 128, 128, 8
    $region9: #{tpu_custom_call.1} parent=1 // pred_fallthru
      _
    // Predicated region
    $region10: #{tpu_custom_call.1} parent=1 // pred_check
      _
    $region11: #{tpu_custom_call.1} parent=1 // pred_check_branch
      %39 = sbr.rel (0) target = $region13
    $region12: #{tpu_custom_call.1} parent=1 // pred_region
      _
    $region13: #{tpu_custom_call.1} parent=1 // pred_fallthru
      _
    // Predicated region
    $region14: #{tpu_custom_call.1} parent=1 // pred_check
      _
    $region15: #{tpu_custom_call.1} parent=1 // pred_check_branch
      %41 = sbr.rel (0) target = $region17
    $region16: #{tpu_custom_call.1} parent=1 // pred_region
      _
    $region17: #{tpu_custom_call.1} parent=1 // pred_fallthru
      _
    // Predicated region
    $region18: #{tpu_custom_call.1} parent=1 // pred_check
      _
    $region19: #{tpu_custom_call.1} parent=1 // pred_check_branch
      %43 = sbr.rel (0) target = $region21
    $region20: #{tpu_custom_call.1} parent=1 // pred_region
      %45 = dma.done [#allocation3], 256
    $region21: #{tpu_custom_call.1} parent=1 // pred_fallthru
      _
    // Predicated region
    $region22: #{tpu_custom_call.1} parent=1 // pred_check
      _
    $region23: #{tpu_custom_call.1} parent=1 // pred_check_branch
      %47 = sbr.rel (0) target = $region25
    $region24: #{tpu_custom_call.1} parent=1 // pred_region
      %49 = dma.done [#allocation6], 512
    $region25: #{tpu_custom_call.1} parent=1 // pred_fallthru
      _
    %v50 = vld [vmem:[#allocation2] sm:$0xff]
    %v51 = vld [vmem:[#allocation2 + $0x8] sm:$0xff]
    %v52 = vld [vmem:[#allocation5] sm:$0xff]
    %v53 = vld [vmem:[#allocation5 + $0x8] sm:$0xff]
    %v54 = vld [vmem:[#allocation5 + $0x10] sm:$0xff]
    %v55 = vld [vmem:[#allocation5 + $0x18] sm:$0xff]
    %v56 = vld [vmem:[%s2] sm:$0x1]
    %v58 = vperm.slane %v56, 0
    %vm60 = vcmask 261120
    %v62 = vsel %vm60, %v50, 0
    %v65 = vsel %vm60, %v51, 0
    %67 = vmatpush.msra.mxu0 0.0
    %68 = vmatpush.msra.mxu0 0.0
    %69 = vmatpush.msra.mxu0 0.0
    %70 = vmatpush.msra.mxu0 0.0
    %71 = vmatpush.msra.mxu0 0.0
    %72 = vmatpush.msra.mxu0 0.0
    %73 = vmatpush.msra.mxu0 0.0
    %74 = vmatpush.msra.mxu0 0.0
    %75 = vmatpush.msra.mxu0 0.0
    %76 = vmatpush.msra.mxu0 0.0
    %77 = vmatpush.msra.mxu0 0.0
    %78 = vmatpush.msra.mxu0 0.0
    %79 = vmatpush.msra.mxu0 %v55
    %80 = vmatpush.msra.mxu0 %v54
    %81 = vmatpush.msra.mxu0 %v53
    %82 = vmatpush.msra.mxu0 %v52
    %83 = vmatmul.f32.gmra.mxu0 %v62
    %v84 = vpop.f32.mrf.mxu0
    %v85 = vadd.f32 %v58, %v84
    %86 = vmatmul.f32.gmra.mxu0 %v65
    %v87 = vpop.f32.mrf.mxu0
    %v88 = vadd.f32 %v58, %v87
    %89 = vdwg.mxu0
    %v90 = vtanh.pop %v85
    %v91 = vtanh.pop %v88
    %v92 = vld [vmem:[%s3] sm:$0x1]
    %v94 = vperm.slane %v92, 0
    %v96 = vmul.f32 %v90, %v94
    %v97 = vmul.f32 %v91, %v94
    %v98 = vsel %vm60, %v96, 0.0
    %99 = vadd.xlane.f32.xlu0 %v98
    %v100 = vpop.xlane.xlu0 %99
    %v101 = vsel %vm60, %v97, 0.0
    %102 = vadd.xlane.f32.xlu0 %v101
    %v103 = vpop.xlane.xlu0 %102
    %v106 = vlaneseq
    %v107 = vand.u32 %v106, 127
    %v108 = vperm.slane %v100, %v107
    %v109 = vperm.slane %v103, %v107
    %vm110 = vcmask 1041409
    %v111 = vsel %vm110, %v109, %v108
    %vm113 = vcmask 58368
    %v114 = vsel %vm113, %v111, -inf
    %115 = vmax.xlane.f32.xlu0 %v114
    %v116 = vpop.xlane.xlu0 %115
    %v118 = vperm.slane %v116, 0
    %v119 = vperm.slane %v116, 1
    %v122 = vsub.f32 %v100, %v118
    %v123 = vsub.f32 %v103, %v119
    %v124 = vmul.f32 %v122, 1.442695
    %v125 = vpow.pop %v124
    %v126 = vmul.f32 %v123, 1.442695
    %v127 = vpow.pop %v126
    %130 = vset.pattern.permute.xlu0 0
    %131 = vperm.xlu0 %130, %v125
    %v132 = vpop.permute.xlu0 %131
    %133 = vset.pattern.permute.xlu0 0
    %134 = vperm.xlu0 %133, %v127
    %v135 = vpop.permute.xlu0 %134
    %v136 = vperm.slane %v132, %v107
    %v137 = vperm.slane %v135, %v107
    %v138 = vsel %vm110, %v137, %v136
    %v140 = vsel %vm113, %v138, 0.0
    %141 = vadd.xlane.f32.xlu0 %v140
    %v142 = vpop.xlane.xlu0 %141
    %v143 = vrcp.pop %v142
    %v145 = vperm.slane %v143, 0
    %v146 = vperm.slane %v143, 1
    %v149 = vmul.f32 %v125, %v145
    %v150 = vmul.f32 %v127, %v146
    %152 = vset.pattern.permute.xlu0 0
    %153 = vperm.xlu0 %152, %v149
    %v154 = vpop.permute.xlu0 %153
    %157 = vset.pattern.permute.xlu0 0
    %158 = vperm.xlu0 %157, %v150
    %v159 = vpop.permute.xlu0 %158
    %v161 = vmul.f32 %v50, %v154
    %v162 = vmul.f32 %v51, %v159
    %v163 = vsel %vm60, %v161, 0.0
    %v164 = vrot.slane %v163, 4
    %v165 = vadd.f32 %v163, %v164
    %v166 = vrot.slane %v165, 2
    %v167 = vadd.f32 %v165, %v166
    %v168 = vrot.slane %v167, 1
    %v169 = vadd.f32 %v167, %v168
    %v170 = vsel %vm60, %v162, 0.0
    %v171 = vrot.slane %v170, 4
    %v172 = vadd.f32 %v170, %v171
    %v173 = vrot.slane %v172, 2
    %v174 = vadd.f32 %v172, %v173
    %v175 = vrot.slane %v174, 1
    %v176 = vadd.f32 %v174, %v175
    %v179 = vsel %vm110, %v176, %v169
    %vm181 = vcmask 254976
    %182 = vst.msk [vmem:[#allocation7] sm:$0x3] %vm181, %v179
    // Predicated region
    $region26: #{tpu_custom_call.1} parent=1 // pred_check
      _
    $region27: #{tpu_custom_call.1} parent=1 // pred_check_branch
      %184 = sbr.rel (0) target = $region29
    $region28: #{tpu_custom_call.1} parent=1 // pred_region
      %186 = vsyncadd [#allocation4], 0
      %s188 = sshll.u32 [#allocation7], 4
      %s189 = int_to_ptr.vmem [resolvable:$true] %s188
      %s190 = sshll.u32 %s4, 4
      %s191 = int_to_ptr.hbm [resolvable:$true] %s190
      %193 = dma.vmem_to_hbm [thread:$0]  %s189, 32, %s191, [#allocation4]
    $region29: #{tpu_custom_call.1} parent=1 // pred_fallthru
      _
    // Predicated region
    $region30: #{tpu_custom_call.1} parent=1 // pred_check
      _
    $region31: #{tpu_custom_call.1} parent=1 // pred_check_branch
      %195 = sbr.rel (0) target = $region33
    $region32: #{tpu_custom_call.1} parent=1 // pred_region
      %197 = dma.done [#allocation4], 32
    $region33: #{tpu_custom_call.1} parent=1 // pred_fallthru
      _
    %198 = vsyncpa [#allocation3], 1
    %199 = vsyncpa [#allocation6], 1
    %200 = vsyncpa [#allocation4], 1

</llo_original>
